<compile_context>
chip_gen: v6e
topology: v6e:2x2x1
jax: 0.10.0
libtpu: 0.0.40
codegen_flags: <defaults>
</compile_context>

<pallas_src>
import math

import jax
import jax.numpy as jnp
from jax.experimental import pallas as pl
from jax.experimental.pallas import tpu as pltpu

# ---------------------------------------------------------------------------
# Tunables
# ---------------------------------------------------------------------------
# Below this many bytes a Pallas launch is pure overhead; XLA can usually fold
# a swapaxes into the consumer's layout / dot_general dimension numbers for
# zero HBM traffic, so we let it.
_SMALL_ACTIVATION_BYTES = 1 << 20  # 1 MiB

# Per-tile byte budget: 2 refs x 2 buffers x 4 MiB = 16 MiB double-buffered.
# Big enough to amortize the ~0.35 us/grid-step overhead and lengthen the
# contiguous runs of the strided writeback; small enough for every generation
# (v7x physical VMEM is only 64 MiB, so no v6e-style 2048-class tiles).
_TARGET_TILE_BYTES = 4 << 20

# Keep the grid from degenerating to 1-2 steps: a multi-step grid lets the
# pipeline overlap DMA with the XLU transpose and gives v7x megacore sharding
# something to split.
_MIN_GRID_STEPS = 8       # preferred (reached by shrinking tT)
_MIN_GRID_STEPS_HARD = 4  # only give up tD == D (contiguous reads) below this

_LANE = 128
_VMEM_LIMIT_BYTES = 32 << 20  # raise v5e's 16 MiB default; fine on v6e/v7x


# ---------------------------------------------------------------------------
# Kernel body
# ---------------------------------------------------------------------------
def _transpose_tile_kernel(x_ref, o_ref):
    # x_ref: (tT, tD) ; o_ref: (tD, tT) -- batch dim squeezed out by BlockSpec.
    # Pure 2-D XLU transpose; the kernel as a whole is HBM/DMA bound.
    o_ref[...] = x_ref[...].T


# ---------------------------------------------------------------------------
# Tile selection
# ---------------------------------------------------------------------------
def _clamp_tile(t: int, dim: int) -> int:
    """Largest legal tile <= t for `dim`: the full extent, or a 128-multiple.

    128-multiples keep both lane positions dense (unmasked vst) and are also
    multiples of every dtype's sublane packing factor (8/16/32).
    """
    if dim <= _LANE or t >= dim:
        return dim
    return max(_LANE, (min(t, dim) // _LANE) * _LANE)


def _num_steps(B: int, T: int, D: int, tT: int, tD: int) -> int:
    return B * (-(-T // tT)) * (-(-D // tD))


def _choose_tiles(B: int, T: int, D: int, itemsize: int) -> tuple[int, int]:
    budget = _TARGET_TILE_BYTES
    min_tT = min(T, _LANE)

    # 1) Prefer the full feature extent: the input-tile read becomes one fully
    #    contiguous HBM DMA, and the strided output writeback gets the longest
    #    contiguous runs -- the dominant cost of a pure transpose.
    if D * itemsize * min_tT <= budget:
        tD = D
    else:
        # D alone blows the budget even with a minimal tT: split ~evenly.
        side = int(math.isqrt(budget // itemsize))
        tD = _clamp_tile(side, D)

    # 2) Spend the remaining budget on tT (amortizes per-step overhead).
    tT = _clamp_tile(budget // (itemsize * tD), T)

    # 3) Guarantee a multi-step grid: shrink tT first (keeps tD = D reads
    #    contiguous) ...
    while _num_steps(B, T, D, tT, tD) < _MIN_GRID_STEPS and tT > _LANE:
        tT = _clamp_tile(tT // 2, T)
    # ... and only sacrifice tD = D if the grid is still degenerate.
    while _num_steps(B, T, D, tT, tD) < _MIN_GRID_STEPS_HARD and tD > _LANE:
        tD = _clamp_tile(tD // 2, D)

    return tT, tD


# ---------------------------------------------------------------------------
# pallas_call wrapper
# ---------------------------------------------------------------------------
def transpose_last2_pallas(x, *, tile_t: int | None = None, tile_d: int | None = None):
    """Pallas TPU kernel computing x.transpose(1, 2) for a 3-D array (B, T, D)."""
    B, T, D = x.shape
    itemsize = jnp.dtype(x.dtype).itemsize

    tT_auto, tD_auto = _choose_tiles(B, T, D, itemsize)
    # Validate/round user overrides: 128-multiples (or full extent) keep both
    # lane positions dense and satisfy sublane packing for f32/bf16/int8.
    tT = _clamp_tile(tile_t, T) if tile_t is not None else tT_auto
    tD = _clamp_tile(tile_d, D) if tile_d is not None else tD_auto

    nT = pl.cdiv(T, tT)
    nD = pl.cdiv(D, tD)

    if tD == D:
        # Feature dim untiled: contiguous input DMA; drop the D grid axis.
        grid = (B, nT)
        in_spec = pl.BlockSpec((pl.Squeezed(), tT, D), lambda b, i: (b, i, 0))
        out_spec = pl.BlockSpec((pl.Squeezed(), D, tT), lambda b, i: (b, 0, i))
    else:
        grid = (B, nT, nD)
        in_spec = pl.BlockSpec((pl.Squeezed(), tT, tD), lambda b, i, j: (b, i, j))
        out_spec = pl.BlockSpec((pl.Squeezed(), tD, tT), lambda b, i, j: (b, j, i))

    # NOTE: if xprof shows exposed output-writeback gaps between grid steps,
    # deepen the pipeline with pipeline_mode=pl.Buffered(3) on the input spec
    # (costs one extra tile of VMEM; still within the 32 MiB limit below).
    return pl.pallas_call(
        _transpose_tile_kernel,
        out_shape=jax.ShapeDtypeStruct((B, D, T), x.dtype),
        grid_spec=pltpu.PrefetchScalarGridSpec(
            num_scalar_prefetch=0,
            grid=grid,
            in_specs=[in_spec],
            out_specs=out_spec,
        ),
        compiler_params=pltpu.CompilerParams(
            # Every grid axis is independent -> shard across both TCs on v7x
            # (measured-neutral on single-TC v5e/v6e).
            dimension_semantics=("parallel",) * len(grid),
            vmem_limit_bytes=_VMEM_LIMIT_BYTES,
        ),
        # Pure bandwidth op: read + write the whole activation once.
        cost_estimate=pl.CostEstimate(
            flops=0,
            transcendentals=0,
            bytes_accessed=2 * B * T * D * itemsize,
        ),
    )(x)


# ---------------------------------------------------------------------------
# Module wrapper (matches the PyTorch `Transpose` semantics)
# ---------------------------------------------------------------------------
class Transpose:
    """JAX/Pallas equivalent of the PyTorch `Transpose` wrapper module."""

    def __init__(self, shape: tuple):
        self.shape = shape

    def __call__(self, x):
        d0, d1 = self.shape
        nd = x.ndim
        d0, d1 = d0 % nd, d1 % nd
        if nd == 3 and {d0, d1} == {1, 2}:
            nbytes = x.size * jnp.dtype(x.dtype).itemsize
            if nbytes >= _SMALL_ACTIVATION_BYTES:
                # Conformer hot path: swap (time, feature) axes via Pallas.
                return transpose_last2_pallas(x)
            # Tiny activation: launch overhead dominates and XLA can usually
            # fold the swapaxes into the consumer's layout for free.
            return jnp.swapaxes(x, d0, d1)
        # TODO(synk): arbitrary-axis transpose (not the Conformer hot path)
        # falls back to plain JAX swapaxes glue.
        return jnp.swapaxes(x, d0, d1)


if __name__ == "__main__":
    key = jax.random.PRNGKey(0)
    module = Transpose(shape=(1, 2))

    # 1) Small (batch, seq, hidden) consistent with Conformer usage -- routes
    #    through the small-activation fast path of the module.
    B, T, D = 2, 8, 32
    x_small = jax.random.normal(key, (B, T, D), dtype=jnp.float32)
    y_small = jax.block_until_ready(module(x_small))
    assert y_small.shape == (B, D, T), y_small.shape
    assert y_small.dtype == x_small.dtype
    assert jnp.array_equal(y_small, jnp.swapaxes(x_small, 1, 2))

    # 2) Medium f32 activation: auto tiles -> tD = D, 2-D grid (B, T tiles).
    B2, T2, D2 = 2, 512, 384
    x_med = jax.random.normal(jax.random.PRNGKey(0), (B2, T2, D2), dtype=jnp.float32)
    y_med = jax.block_until_ready(transpose_last2_pallas(x_med))
    assert y_med.shape == (B2, D2, T2), y_med.shape
    assert jnp.array_equal(y_med, jnp.swapaxes(x_med, 1, 2))

    # Same shape through the module (above the small-size threshold).
    y_mod = jax.block_until_ready(module(x_med))
    assert jnp.array_equal(y_mod, jnp.swapaxes(x_med, 1, 2))

    # 3) Explicit user tiles exercising the 3-D tiled grid path (tD < D).
    y_usr = jax.block_until_ready(
        transpose_last2_pallas(x_med, tile_t=256, tile_d=128)
    )
    assert jnp.array_equal(y_usr, jnp.swapaxes(x_med, 1, 2))

    # 4) Non-tile-divisible T to exercise masked edge blocks (520 = 4*128 + 8).
    x_odd = jax.random.normal(jax.random.PRNGKey(0), (1, 520, 384), dtype=jnp.float32)
    y_odd = jax.block_until_ready(transpose_last2_pallas(x_odd))
    assert y_odd.shape == (1, 384, 520), y_odd.shape
    assert jnp.array_equal(y_odd, jnp.swapaxes(x_odd, 1, 2))

    # 5) bf16 path: dtype-aware tiles (sublane packing factor 16 handled by the
    #    128-multiple rule).
    x_bf = jax.random.normal(jax.random.PRNGKey(0), (2, 256, 512)).astype(jnp.bfloat16)
    y_bf = jax.block_until_ready(transpose_last2_pallas(x_bf))
    assert y_bf.shape == (2, 512, 256), y_bf.shape
    assert jnp.array_equal(y_bf, jnp.swapaxes(x_bf, 1, 2))

    print("KERNEL_OK")
</pallas_src>

<mosaic_0001>
module attributes {stable_mosaic.version = 11 : i64} {
  func.func @_transpose_tile_kernel(%arg0: i32, %arg1: i32, %arg2: memref<1x128x384xf32, #tpu.memory_space<vmem>>, %arg3: memref<1x384x128xf32, #tpu.memory_space<vmem>>) attributes {dimension_semantics = [#tpu.dimension_semantics<parallel>, #tpu.dimension_semantics<parallel>], iteration_bounds = array<i64: 2, 4>, scalar_prefetch = 0 : i64, scratch_operands = 0 : i64, tpu.core_type = #tpu.core_type<tc>, window_params = [{transform_indices = @transform_0, window_bounds = array<i64: 1, 128, 384>}, {transform_indices = @transform_1, window_bounds = array<i64: 1, 384, 128>}]} {
    %c0 = arith.constant 0 : index
    %c0_0 = arith.constant 0 : index
    %c0_1 = arith.constant 0 : index
    %0 = vector.load %arg2[%c0, %c0_0, %c0_1] : memref<1x128x384xf32, #tpu.memory_space<vmem>>, vector<1x128x384xf32>
    %1 = vector.shape_cast %0 : vector<1x128x384xf32> to vector<128x384xf32>
    %2 = tpu.transpose %1, [1, 0] : vector<128x384xf32> -> vector<384x128xf32>
    %c0_2 = arith.constant 0 : index
    %c0_3 = arith.constant 0 : index
    %c0_4 = arith.constant 0 : index
    %3 = vector.load %arg3[%c0_2, %c0_3, %c0_4] : memref<1x384x128xf32, #tpu.memory_space<vmem>>, vector<1x384x128xf32>
    %4 = vector.shape_cast %3 : vector<1x384x128xf32> to vector<384x128xf32>
    %5 = vector.shape_cast %2 : vector<384x128xf32> to vector<1x384x128xf32>
    tpu.vector_store %arg3[%c0_2, %c0_3, %c0_4], %5 {strides = array<i32>} : memref<1x384x128xf32, #tpu.memory_space<vmem>>, vector<1x384x128xf32>,
    return
  }
  func.func @transform_0(%arg0: i32, %arg1: i32) -> (i32, i32, i32) {
    %c0_i32 = arith.constant 0 : i32
    %c0_i32_0 = arith.constant 0 : i32
    return %arg0, %arg1, %c0_i32 : i32, i32, i32
  }
  func.func @transform_1(%arg0: i32, %arg1: i32) -> (i32, i32, i32) {
    %c0_i32 = arith.constant 0 : i32
    %c0_i32_0 = arith.constant 0 : i32
    return %arg0, %c0_i32, %arg1 : i32, i32, i32
  }
}

</mosaic_0001>

<llo_original>
// kernel: tpu_custom_call.1
$region0: #{tpu_custom_call.1}
  #allocation0 [shape = 'u32[]', space=smem, size = 0x4, offset = 0x4, fixed_abs, tag = 'smem constant byte address 0x4 - core index']
  #allocation1 [shape = 'u32[144,128]{1,0:T(1,128)}', space=vmem, size = 0x12000, scoped, tag = 'internal scratch']
  %s0 = inlined_call_operand.hbm [shape: f32[2,512,384], index: 0, kind: input, shape index: {}]
  %s1 = inlined_call_operand.hbm [shape: f32[2,384,512], index: 1, kind: output, shape index: {}]
  %s2 = sld [smem:[#allocation0]]
  $region41: #{tpu_custom_call.1} parent=0
    _
  %s4 = ssub.s32 1, %s2
  %s5 = scalar_select 0, %s4, %s2
  $region1: #{tpu_custom_call.1} parent=0
    #allocation2 [shape = 'u8[393216]{0}', space=vmem, size = 0x60000, scoped, tag = 'input window, operand 0']
    #allocation3 [shape = 's32[2]{0}', space=sflag, size = 0x8, scoped, tag = 'scoped memory for tpu_custom_call.1']
    #allocation4 [shape = 's32[2]{0}', space=sflag, size = 0x8, scoped, tag = 'scoped memory for tpu_custom_call.1']
    #allocation5 [shape = 'u8[393216]{0}', space=vmem, size = 0x60000, scoped, tag = 'output window, operand 0']
    %6 = vsyncpa [#allocation3], 0
    %s7 = scalar_lea.sflag [#allocation3], 1
    %8 = vsyncpa %s7, 0
    %9 = vsyncpa [#allocation4], 0
    %s10 = scalar_lea.sflag [#allocation4], 1
    %11 = vsyncpa %s10, 0
    loop: start=0, step=1, limit=10
    $region2: #{tpu_custom_call.1} parent=1 // loop_pre_header
      _
    $region3: #{tpu_custom_call.1} parent=1 // loop_header
      %s13 = sphi 0, %s17
      %p14 = scmp.ge.s32.totalorder %s13, 10
      %s20 = sphi 0, %s32
      %s21 = sphi 0, %s28
      %s22 = sphi 0, %s20
      %s23 = sphi 0, %s21
      %s24 = sphi 0, %s22
      %s25 = sphi 0, %s23
      %s37 = sphi 0, %s39
      %s40 = sphi 0, %s37
      %s41 = sphi 0, %s40
      %s57 = sphi 0, %s41
      %s65 = sphi 0, %s67
      %s68 = sphi 0, %s65
      %s69 = sphi 0, %s68
      %s85 = sphi 0, %s69
    $region4: #{tpu_custom_call.1} parent=1 // loop_header_branch
      %16 = sbr.rel (%p14) target = $region8
    $region5: #{tpu_custom_call.1} parent=1 // loop_body
      %s18 = ssub.s32 %s13, 1
      %s19 = ssub.s32 %s13, 2
      %s26 = sadd.s32 1, %s21
      %p27 = scmp.ge.s32.totalorder %s26, 4
      %s28 = scalar_select %p27, 0, %s26
      %s29 = sadd.s32 1, %s20
      %s30 = scalar_select %p27, %s29, %s20
      %p31 = scmp.ge.s32.totalorder %s30, 2
      %s32 = scalar_select %p31, 0, %s30
      %s33 = ssub.s32 %s20, %s32
      %s34 = ssub.s32 %s21, %s28
      %s35 = sor.u32 %s33, %s34
      %p36 = scmp.eq.s32.totalorder %s35, 0
      %s38 = sadd.s32 %s37, 1
      %s39 = scalar_select %p36, %s37, %s38
      %p42 = pneg %p36
      %p43 = scmp.eq.s32.totalorder %s13, 7
      %p44 = por %p42, %p43
      %p45 = scmp.ne.s32.totalorder %s37, %s40
      %p46 = scmp.eq.s32.totalorder %s13, 0
      %p47 = por %p45, %p46
      %p48 = scmp.ne.s32.totalorder %s37, %s40
      %p49 = scmp.eq.s32.totalorder %s18, 7
      %p50 = por %p48, %p49
      %p51 = scmp.ne.s32.totalorder %s40, %s41
      %p52 = scmp.eq.s32.totalorder %s18, 0
      %p53 = por %p51, %p52
      %p54 = scmp.ne.s32.totalorder %s40, %s41
      %p55 = scmp.eq.s32.totalorder %s19, 7
      %p56 = por %p54, %p55
      %p58 = scmp.ne.s32.totalorder %s41, %s57
      %p59 = scmp.eq.s32.totalorder %s19, 0
      %p60 = por %p58, %p59
      %s61 = ssub.s32 %s20, %s32
      %s62 = ssub.s32 %s21, %s28
      %s63 = sor.u32 %s61, %s62
      %p64 = scmp.eq.s32.totalorder %s63, 0
      %s66 = sadd.s32 %s65, 1
      %s67 = scalar_select %p64, %s65, %s66
      %p70 = pneg %p64
      %p71 = scmp.eq.s32.totalorder %s13, 7
      %p72 = por %p70, %p71
      %p73 = scmp.ne.s32.totalorder %s65, %s68
      %p74 = scmp.eq.s32.totalorder %s13, 0
      %p75 = por %p73, %p74
      %p76 = scmp.ne.s32.totalorder %s65, %s68
      %p77 = scmp.eq.s32.totalorder %s18, 7
      %p78 = por %p76, %p77
      %p79 = scmp.ne.s32.totalorder %s68, %s69
      %p80 = scmp.eq.s32.totalorder %s18, 0
      %p81 = por %p79, %p80
      %p82 = scmp.ne.s32.totalorder %s68, %s69
      %p83 = scmp.eq.s32.totalorder %s19, 7
      %p84 = por %p82, %p83
      %p86 = scmp.ne.s32.totalorder %s69, %s85
      %p87 = scmp.eq.s32.totalorder %s19, 0
      %p88 = por %p86, %p87
      %p89 = scmp.le.s32.totalorder 1, %s13
      %p90 = scmp.lt.s32.totalorder %s13, 9
      %p91 = pnand %p89, %p90
      %p92 = pneg %p91
      // Predicated region
      $region9: #{tpu_custom_call.1} parent=5 // pred_check
        _
      $region10: #{tpu_custom_call.1} parent=5 // pred_check_branch
        %94 = sbr.rel (%p91) target = $region12
      $region11: #{tpu_custom_call.1} parent=5 // pred_region
        %s95 = ssub.s32 %s13, 1
      $region12: #{tpu_custom_call.1} parent=5 // pred_fallthru
        _
      %p96 = scmp.lt.s32.totalorder %s13, 8
      // Predicated region
      $region13: #{tpu_custom_call.1} parent=5 // pred_check
        %p97 = pneg %p96
      $region14: #{tpu_custom_call.1} parent=5 // pred_check_branch
        %99 = sbr.rel (%p97) target = $region16
      $region15: #{tpu_custom_call.1} parent=5 // pred_region
        // Predicated region
        $region17: #{tpu_custom_call.1} parent=15 // pred_check
          %p100 = pneg %p47
        $region18: #{tpu_custom_call.1} parent=15 // pred_check_branch
          %102 = sbr.rel (%p100) target = $region20
        $region19: #{tpu_custom_call.1} parent=15 // pred_region
          %s103 = sand.u32 %s37, 1
          %s104 = scalar_lea.sflag [#allocation3], %s103
          %s105 = sand.u32 %s37, 1
          %s106 = smul.addr %s105, 384
          %s107 = scalar_lea.vmem [#allocation2], %s106
          %s108 = smul.u32 16, %s21
          %s110 = ssub.s32 6144, 6144
          %111 = vsyncadd %s104, %s110
          %s112 = smul.addr %s108, 3
          %s113 = smul.addr %s20, 192
          %s114 = sadd.s32 %s112, %s113
          %s115 = smul.addr %s114, 128
          %s116 = scalar_lea.hbm %s0, %s115
          %s117 = sshll.u32 %s107, 4
          %s118 = int_to_ptr.vmem [resolvable:$true] %s117
          %123 = dma.hbm_to_vmem [thread:$0]  %s116, 6144, %s118, %s104, 384, 384, 24
        $region20: #{tpu_custom_call.1} parent=15 // pred_fallthru
          _
      $region16: #{tpu_custom_call.1} parent=5 // pred_fallthru
        _
      %p124 = scmp.le.s32.totalorder 1, %s13
      %p125 = scmp.lt.s32.totalorder %s13, 9
      %p126 = pnand %p124, %p125
      %p127 = pneg %p126
      // Predicated region
      $region21: #{tpu_custom_call.1} parent=5 // pred_check
        _
      $region22: #{tpu_custom_call.1} parent=5 // pred_check_branch
        %129 = sbr.rel (%p126) target = $region24
      $region23: #{tpu_custom_call.1} parent=5 // pred_region
        %s130 = ssub.s32 %s13, 1
        %s131 = sand.u32 %s40, 1
        %s132 = scalar_lea.sflag [#allocation3], %s131
        %s133 = sand.u32 %s40, 1
        %s134 = smul.addr %s133, 384
        %s135 = scalar_lea.vmem [#allocation2], %s134
        // Predicated region
        $region25: #{tpu_custom_call.1} parent=23 // pred_check
          %p136 = pneg %p53
        $region26: #{tpu_custom_call.1} parent=23 // pred_check_branch
          %138 = sbr.rel (%p136) target = $region28
        $region27: #{tpu_custom_call.1} parent=23 // pred_region
          %139 = dma.done %s132, 6144
        $region28: #{tpu_custom_call.1} parent=23 // pred_fallthru
          _
        %s140 = sand.u32 %s40, 1
        %s141 = scalar_lea.sflag [#allocation3], %s140
        %s142 = sand.u32 %s40, 1
        %s143 = smul.addr %s142, 384
        %s144 = scalar_lea.vmem [#allocation2], %s143
        %p145 = pneg %p53
        %p146 = pneg %p50
        %p147 = pneg %p81
        %p148 = pneg %p78
        %s149 = sand.u32 %s68, 1
        %s150 = scalar_lea.sflag [#allocation4], %s149
        %s151 = sand.u32 %s68, 1
        %s152 = smul.addr %s151, 384
        %s153 = scalar_lea.vmem [#allocation5], %s152
        %s154 = smul.u32 16, %s23
        %v155 = vld [vmem:[%s135] sm:$0xff]
        %v156 = vld [vmem:[%s135 + $0x8] sm:$0xff]
        %v157 = vld [vmem:[%s135 + $0x10] sm:$0xff]
        %v158 = vld [vmem:[%s135 + $0x18] sm:$0xff]
        %v159 = vld [vmem:[%s135 + $0x20] sm:$0xff]
        %v160 = vld [vmem:[%s135 + $0x28] sm:$0xff]
        %v161 = vld [vmem:[%s135 + $0x30] sm:$0xff]
        %v162 = vld [vmem:[%s135 + $0x38] sm:$0xff]
        %v163 = vld [vmem:[%s135 + $0x40] sm:$0xff]
        %v164 = vld [vmem:[%s135 + $0x48] sm:$0xff]
        %v165 = vld [vmem:[%s135 + $0x50] sm:$0xff]
        %v166 = vld [vmem:[%s135 + $0x58] sm:$0xff]
        %v167 = vld [vmem:[%s135 + $0x60] sm:$0xff]
        %v168 = vld [vmem:[%s135 + $0x68] sm:$0xff]
        %v169 = vld [vmem:[%s135 + $0x70] sm:$0xff]
        %v170 = vld [vmem:[%s135 + $0x78] sm:$0xff]
        %v171 = vld [vmem:[%s135 + $0x80] sm:$0xff]
        %v172 = vld [vmem:[%s135 + $0x88] sm:$0xff]
        %v173 = vld [vmem:[%s135 + $0x90] sm:$0xff]
        %v174 = vld [vmem:[%s135 + $0x98] sm:$0xff]
        %v175 = vld [vmem:[%s135 + $0xa0] sm:$0xff]
        %v176 = vld [vmem:[%s135 + $0xa8] sm:$0xff]
        %v177 = vld [vmem:[%s135 + $0xb0] sm:$0xff]
        %v178 = vld [vmem:[%s135 + $0xb8] sm:$0xff]
        %v179 = vld [vmem:[%s135 + $0xc0] sm:$0xff]
        %v180 = vld [vmem:[%s135 + $0xc8] sm:$0xff]
        %v181 = vld [vmem:[%s135 + $0xd0] sm:$0xff]
        %v182 = vld [vmem:[%s135 + $0xd8] sm:$0xff]
        %v183 = vld [vmem:[%s135 + $0xe0] sm:$0xff]
        %v184 = vld [vmem:[%s135 + $0xe8] sm:$0xff]
        %v185 = vld [vmem:[%s135 + $0xf0] sm:$0xff]
        %v186 = vld [vmem:[%s135 + $0xf8] sm:$0xff]
        %v187 = vld [vmem:[%s135 + $0x100] sm:$0xff]
        %v188 = vld [vmem:[%s135 + $0x108] sm:$0xff]
        %v189 = vld [vmem:[%s135 + $0x110] sm:$0xff]
        %v190 = vld [vmem:[%s135 + $0x118] sm:$0xff]
        %v191 = vld [vmem:[%s135 + $0x120] sm:$0xff]
        %v192 = vld [vmem:[%s135 + $0x128] sm:$0xff]
        %v193 = vld [vmem:[%s135 + $0x130] sm:$0xff]
        %v194 = vld [vmem:[%s135 + $0x138] sm:$0xff]
        %v195 = vld [vmem:[%s135 + $0x140] sm:$0xff]
        %v196 = vld [vmem:[%s135 + $0x148] sm:$0xff]
        %v197 = vld [vmem:[%s135 + $0x150] sm:$0xff]
        %v198 = vld [vmem:[%s135 + $0x158] sm:$0xff]
        %v199 = vld [vmem:[%s135 + $0x160] sm:$0xff]
        %v200 = vld [vmem:[%s135 + $0x168] sm:$0xff]
        %v201 = vld [vmem:[%s135 + $0x170] sm:$0xff]
        %v202 = vld [vmem:[%s135 + $0x178] sm:$0xff]
        %203 = vxpose.xlu0.b32.start [1/16] %v155, 128
        %204 = vxpose.xlu0.b32.cont [2/16] %v158, 128
        %205 = vxpose.xlu0.b32.cont [3/16] %v161, 128
        %206 = vxpose.xlu0.b32.cont [4/16] %v164, 128
        %207 = vxpose.xlu0.b32.cont [5/16] %v167, 128
        %208 = vxpose.xlu0.b32.cont [6/16] %v170, 128
        %209 = vxpose.xlu0.b32.cont [7/16] %v173, 128
        %210 = vxpose.xlu0.b32.cont [8/16] %v176, 128
        %211 = vxpose.xlu0.b32.cont [9/16] %v179, 128
        %212 = vxpose.xlu0.b32.cont [10/16] %v182, 128
        %213 = vxpose.xlu0.b32.cont [11/16] %v185, 128
        %214 = vxpose.xlu0.b32.cont [12/16] %v188, 128
        %215 = vxpose.xlu0.b32.cont [13/16] %v191, 128
        %216 = vxpose.xlu0.b32.cont [14/16] %v194, 128
        %217 = vxpose.xlu0.b32.cont [15/16] %v197, 128
        %218 = vxpose.xlu0.b32.end [16/16] %v200, 128
        %v219 = vpop.trf.xlu0
        %v220 = vpop.trf.xlu0
        %v221 = vpop.trf.xlu0
        %v222 = vpop.trf.xlu0
        %v223 = vpop.trf.xlu0
        %v224 = vpop.trf.xlu0
        %v225 = vpop.trf.xlu0
        %v226 = vpop.trf.xlu0
        %v227 = vpop.trf.xlu0
        %v228 = vpop.trf.xlu0
        %v229 = vpop.trf.xlu0
        %v230 = vpop.trf.xlu0
        %v231 = vpop.trf.xlu0
        %v232 = vpop.trf.xlu0
        %v233 = vpop.trf.xlu0
        %v234 = vpop.trf.xlu0
        %235 = vxpose.xlu0.b32.start [1/16] %v156, 128
        %236 = vxpose.xlu0.b32.cont [2/16] %v159, 128
        %237 = vxpose.xlu0.b32.cont [3/16] %v162, 128
        %238 = vxpose.xlu0.b32.cont [4/16] %v165, 128
        %239 = vxpose.xlu0.b32.cont [5/16] %v168, 128
        %240 = vxpose.xlu0.b32.cont [6/16] %v171, 128
        %241 = vxpose.xlu0.b32.cont [7/16] %v174, 128
        %242 = vxpose.xlu0.b32.cont [8/16] %v177, 128
        %243 = vxpose.xlu0.b32.cont [9/16] %v180, 128
        %244 = vxpose.xlu0.b32.cont [10/16] %v183, 128
        %245 = vxpose.xlu0.b32.cont [11/16] %v186, 128
        %246 = vxpose.xlu0.b32.cont [12/16] %v189, 128
        %247 = vxpose.xlu0.b32.cont [13/16] %v192, 128
        %248 = vxpose.xlu0.b32.cont [14/16] %v195, 128
        %249 = vxpose.xlu0.b32.cont [15/16] %v198, 128
        %250 = vxpose.xlu0.b32.end [16/16] %v201, 128
        %v251 = vpop.trf.xlu0
        %v252 = vpop.trf.xlu0
        %v253 = vpop.trf.xlu0
        %v254 = vpop.trf.xlu0
        %v255 = vpop.trf.xlu0
        %v256 = vpop.trf.xlu0
        %v257 = vpop.trf.xlu0
        %v258 = vpop.trf.xlu0
        %v259 = vpop.trf.xlu0
        %v260 = vpop.trf.xlu0
        %v261 = vpop.trf.xlu0
        %v262 = vpop.trf.xlu0
        %v263 = vpop.trf.xlu0
        %v264 = vpop.trf.xlu0
        %v265 = vpop.trf.xlu0
        %v266 = vpop.trf.xlu0
        %267 = vxpose.xlu0.b32.start [1/16] %v157, 128
        %268 = vxpose.xlu0.b32.cont [2/16] %v160, 128
        %269 = vxpose.xlu0.b32.cont [3/16] %v163, 128
        %270 = vxpose.xlu0.b32.cont [4/16] %v166, 128
        %271 = vxpose.xlu0.b32.cont [5/16] %v169, 128
        %272 = vxpose.xlu0.b32.cont [6/16] %v172, 128
        %273 = vxpose.xlu0.b32.cont [7/16] %v175, 128
        %274 = vxpose.xlu0.b32.cont [8/16] %v178, 128
        %275 = vxpose.xlu0.b32.cont [9/16] %v181, 128
        %276 = vxpose.xlu0.b32.cont [10/16] %v184, 128
        %277 = vxpose.xlu0.b32.cont [11/16] %v187, 128
        %278 = vxpose.xlu0.b32.cont [12/16] %v190, 128
        %279 = vxpose.xlu0.b32.cont [13/16] %v193, 128
        %280 = vxpose.xlu0.b32.cont [14/16] %v196, 128
        %281 = vxpose.xlu0.b32.cont [15/16] %v199, 128
        %282 = vxpose.xlu0.b32.end [16/16] %v202, 128
        %v283 = vpop.trf.xlu0
        %v284 = vpop.trf.xlu0
        %v285 = vpop.trf.xlu0
        %v286 = vpop.trf.xlu0
        %v287 = vpop.trf.xlu0
        %v288 = vpop.trf.xlu0
        %v289 = vpop.trf.xlu0
        %v290 = vpop.trf.xlu0
        %v291 = vpop.trf.xlu0
        %v292 = vpop.trf.xlu0
        %v293 = vpop.trf.xlu0
        %v294 = vpop.trf.xlu0
        %v295 = vpop.trf.xlu0
        %v296 = vpop.trf.xlu0
        %v297 = vpop.trf.xlu0
        %v298 = vpop.trf.xlu0
        %299 = vst [vmem:[%s153] sm:$0xff] %v219
        %300 = vst [vmem:[%s153 + $0x8] sm:$0xff] %v220
        %301 = vst [vmem:[%s153 + $0x10] sm:$0xff] %v221
        %302 = vst [vmem:[%s153 + $0x18] sm:$0xff] %v222
        %303 = vst [vmem:[%s153 + $0x20] sm:$0xff] %v223
        %304 = vst [vmem:[%s153 + $0x28] sm:$0xff] %v224
        %305 = vst [vmem:[%s153 + $0x30] sm:$0xff] %v225
        %306 = vst [vmem:[%s153 + $0x38] sm:$0xff] %v226
        %307 = vst [vmem:[%s153 + $0x40] sm:$0xff] %v227
        %308 = vst [vmem:[%s153 + $0x48] sm:$0xff] %v228
        %309 = vst [vmem:[%s153 + $0x50] sm:$0xff] %v229
        %310 = vst [vmem:[%s153 + $0x58] sm:$0xff] %v230
        %311 = vst [vmem:[%s153 + $0x60] sm:$0xff] %v231
        %312 = vst [vmem:[%s153 + $0x68] sm:$0xff] %v232
        %313 = vst [vmem:[%s153 + $0x70] sm:$0xff] %v233
        %314 = vst [vmem:[%s153 + $0x78] sm:$0xff] %v234
        %315 = vst [vmem:[%s153 + $0x80] sm:$0xff] %v251
        %316 = vst [vmem:[%s153 + $0x88] sm:$0xff] %v252
        %317 = vst [vmem:[%s153 + $0x90] sm:$0xff] %v253
        %318 = vst [vmem:[%s153 + $0x98] sm:$0xff] %v254
        %319 = vst [vmem:[%s153 + $0xa0] sm:$0xff] %v255
        %320 = vst [vmem:[%s153 + $0xa8] sm:$0xff] %v256
        %321 = vst [vmem:[%s153 + $0xb0] sm:$0xff] %v257
        %322 = vst [vmem:[%s153 + $0xb8] sm:$0xff] %v258
        %323 = vst [vmem:[%s153 + $0xc0] sm:$0xff] %v259
        %324 = vst [vmem:[%s153 + $0xc8] sm:$0xff] %v260
        %325 = vst [vmem:[%s153 + $0xd0] sm:$0xff] %v261
        %326 = vst [vmem:[%s153 + $0xd8] sm:$0xff] %v262
        %327 = vst [vmem:[%s153 + $0xe0] sm:$0xff] %v263
        %328 = vst [vmem:[%s153 + $0xe8] sm:$0xff] %v264
        %329 = vst [vmem:[%s153 + $0xf0] sm:$0xff] %v265
        %330 = vst [vmem:[%s153 + $0xf8] sm:$0xff] %v266
        %331 = vst [vmem:[%s153 + $0x100] sm:$0xff] %v283
        %332 = vst [vmem:[%s153 + $0x108] sm:$0xff] %v284
        %333 = vst [vmem:[%s153 + $0x110] sm:$0xff] %v285
        %334 = vst [vmem:[%s153 + $0x118] sm:$0xff] %v286
        %335 = vst [vmem:[%s153 + $0x120] sm:$0xff] %v287
        %336 = vst [vmem:[%s153 + $0x128] sm:$0xff] %v288
        %337 = vst [vmem:[%s153 + $0x130] sm:$0xff] %v289
        %338 = vst [vmem:[%s153 + $0x138] sm:$0xff] %v290
        %339 = vst [vmem:[%s153 + $0x140] sm:$0xff] %v291
        %340 = vst [vmem:[%s153 + $0x148] sm:$0xff] %v292
        %341 = vst [vmem:[%s153 + $0x150] sm:$0xff] %v293
        %342 = vst [vmem:[%s153 + $0x158] sm:$0xff] %v294
        %343 = vst [vmem:[%s153 + $0x160] sm:$0xff] %v295
        %344 = vst [vmem:[%s153 + $0x168] sm:$0xff] %v296
        %345 = vst [vmem:[%s153 + $0x170] sm:$0xff] %v297
        %346 = vst [vmem:[%s153 + $0x178] sm:$0xff] %v298
        %s347 = sand.u32 %s68, 1
        %s348 = scalar_lea.sflag [#allocation4], %s347
        %s349 = sand.u32 %s68, 1
        %s350 = smul.addr %s349, 384
        %s351 = scalar_lea.vmem [#allocation5], %s350
        // Predicated region
        $region29: #{tpu_custom_call.1} parent=23 // pred_check
          %p352 = pneg %p78
        $region30: #{tpu_custom_call.1} parent=23 // pred_check_branch
          %354 = sbr.rel (%p352) target = $region32
        $region31: #{tpu_custom_call.1} parent=23 // pred_region
          %s356 = ssub.s32 6144, 6144
          %357 = vsyncadd %s348, %s356
          %s358 = smul.addr %s22, 192
          %s359 = sadd.s32 %s23, %s358
          %s360 = smul.addr %s359, 128
          %s361 = scalar_lea.hbm %s1, %s360
          %s362 = sshll.u32 %s351, 4
          %s363 = int_to_ptr.vmem [resolvable:$true] %s362
          %368 = dma.vmem_to_hbm [thread:$0]  %s363, 6144, %s361, %s348, 128, 512, 8
        $region32: #{tpu_custom_call.1} parent=23 // pred_fallthru
          _
      $region24: #{tpu_custom_call.1} parent=5 // pred_fallthru
        _
      %p369 = scmp.le.s32.totalorder 2, %s13
      // Predicated region
      $region33: #{tpu_custom_call.1} parent=5 // pred_check
        %p370 = pneg %p369
      $region34: #{tpu_custom_call.1} parent=5 // pred_check_branch
        %372 = sbr.rel (%p370) target = $region36
      $region35: #{tpu_custom_call.1} parent=5 // pred_region
        %s373 = ssub.s32 %s13, 2
        // Predicated region
        $region37: #{tpu_custom_call.1} parent=35 // pred_check
          %p374 = pneg %p84
        $region38: #{tpu_custom_call.1} parent=35 // pred_check_branch
          %376 = sbr.rel (%p374) target = $region40
        $region39: #{tpu_custom_call.1} parent=35 // pred_region
          %s377 = sand.u32 %s69, 1
          %s378 = scalar_lea.sflag [#allocation4], %s377
          %s379 = sand.u32 %s69, 1
          %s380 = smul.addr %s379, 384
          %s381 = scalar_lea.vmem [#allocation5], %s380
          %382 = dma.done %s378, 6144
        $region40: #{tpu_custom_call.1} parent=35 // pred_fallthru
          _
      $region36: #{tpu_custom_call.1} parent=5 // pred_fallthru
        _
    $region6: #{tpu_custom_call.1} parent=1 // loop_footer
      %s17 = sadd.s32 1, %s13
    $region7: #{tpu_custom_call.1} parent=1 // loop_footer_branch
      %12 = sbr.rel target = $region3
    $region8: #{tpu_custom_call.1} parent=1 // loop_exit
      _
    %383 = vsyncpa [#allocation3], 1
    %s384 = scalar_lea.sflag [#allocation3], 1
    %385 = vsyncpa %s384, 1
    %386 = vsyncpa [#allocation4], 1
    %s387 = scalar_lea.sflag [#allocation4], 1
    %388 = vsyncpa %s387, 1

</llo_original>
